<compile_context>
chip_gen: v7x
topology: tpu7x:2x2x1
jax: 0.10.0
libtpu: 0.0.40
codegen_flags: <defaults>
</compile_context>

<pallas_src>
import jax
import jax.numpy as jnp
from jax.experimental import pallas as pl
from jax.experimental.pallas import tpu as pltpu


def _round_up(x, m):
    return (x + m - 1) // m * m


def _cdiv(a, b):
    return (a + b - 1) // b


def _select_config(n_rows, d_model, vocab_p, out_itemsize, mxu_itemsize,
                   tm_max=None, tn_max=None, allow_cache=True):
    """Pick (tm, tn, cache_dtype, vmem_limit) for the current generation."""
    try:
        vmem_cap = int(pltpu.get_tpu_info().vmem_capacity_bytes)
    except Exception:  # pragma: no cover - older jax / CPU interpret fallback
        vmem_cap = 128 * 1024 * 1024
    budget = vmem_cap - (16 << 20)          # headroom for compiler internals

    if vmem_cap <= (64 << 20):              # v7x-class: 64 MiB VMEM, 2 TCs
        tm_target, tn_target = 512, 1024
    else:                                   # v5e / v6e: 128 MiB VMEM
        tm_target, tn_target = 1024, 1024
    if tm_max is not None:
        tm_target = min(tm_target, max(8, _round_up(tm_max, 8)))
    if tn_max is not None:
        tn_target = min(tn_target, max(128, _round_up(tn_max, 128)))

    # Vocab tile: multiple of 128 that exactly divides vocab_p (no extra pad,
    # no wrapper-side vocab slice when vocab is 128-aligned).
    tn = min(tn_target, vocab_p)
    while vocab_p % tn:
        tn -= 128

    rows_aligned = _round_up(max(n_rows, 1), 8)
    tm = min(tm_target, rows_aligned)
    # Keep >= 2 row tiles where rows allow so v7x's 2nd TensorCore gets work.
    if rows_aligned > 8 and _cdiv(rows_aligned, tm) < 2:
        tm = _round_up(_cdiv(rows_aligned, 2), 8)

    def needed(tm_, tn_, cache_itm):
        io = 2 * (tm_ * d_model * mxu_itemsize      # x block (double buffered)
                  + d_model * tn_ * mxu_itemsize    # weight block
                  + tn_ * 4                         # bias block
                  + tm_ * tn_ * out_itemsize)       # output block
        tmp = tm_ * tn_ * 4                         # in-flight f32 logits tile
        scr = 2 * tm_ * 4                           # m / l scratch
        cache = tm_ * vocab_p * cache_itm           # logits cache
        return io + tmp + scr + cache

    if allow_cache:
        cache_options = ((4, jnp.float32), (2, jnp.bfloat16), (0, None))
    else:
        cache_options = ((0, None),)

    chosen_itm, cache_dtype = None, None
    for _ in range(64):
        for c_itm, c_dt in cache_options:
            if needed(tm, tn, c_itm) <= budget:
                chosen_itm, cache_dtype = c_itm, c_dt
                break
        if chosen_itm is not None:
            break
        if tm > 8:
            tm = max(8, _round_up(tm // 2, 8))
        elif tn > 128:
            tn = max(128, (tn // 2) // 128 * 128)
            while vocab_p % tn:
                tn -= 128
        else:
            chosen_itm, cache_dtype = 0, None
            break
    if chosen_itm is None:
        chosen_itm, cache_dtype = 0, None

    vmem_limit = int(min(vmem_cap - (8 << 20),
                         max(needed(tm, tn, chosen_itm) + (4 << 20), 8 << 20)))
    return tm, tn, cache_dtype, vmem_limit


def _make_generator_kernel(nv, use_cache):
    """Fused projection + online log_softmax kernel.

    Grid axis 1 has 2*nv steps:
      j <  nv : compute logits tile j (cache it if enabled), update running
                max m and sum-of-exp l.
      j == nv : fold logsumexp = m + log(l) into m_scr (once per row tile).
      j >= nv : write log_softmax for vocab tile j - nv from the cache, or
                recompute the tile when the cache does not fit VMEM.
    """

    def kernel(x_ref, w_ref, b_ref, o_ref, m_scr, l_scr, *cache):

        def logits_tile():
            acc = jnp.dot(x_ref[...], w_ref[...],
                          preferred_element_type=jnp.float32)
            return acc + b_ref[...].astype(jnp.float32)

        j = pl.program_id(1)

        @pl.when(j == 0)
        def _init():
            m_scr[...] = jnp.full_like(m_scr, -jnp.inf)
            l_scr[...] = jnp.zeros_like(l_scr)

        @pl.when(j < nv)
        def _accumulate():
            logits = logits_tile()
            if use_cache:
                cache[0][j] = logits.astype(cache[0].dtype)
            m_prev = m_scr[...]
            m_new = jnp.maximum(m_prev,
                                jnp.max(logits, axis=-1, keepdims=True))
            l_scr[...] = (l_scr[...] * jnp.exp(m_prev - m_new)
                          + jnp.sum(jnp.exp(logits - m_new),
                                    axis=-1, keepdims=True))
            m_scr[...] = m_new

        @pl.when(j == nv)
        def _fold_lse():
            # One EUP log per row tile; phase-1 steps only subtract m_scr.
            m_scr[...] = m_scr[...] + jnp.log(l_scr[...])

        @pl.when(j >= nv)
        def _write():
            if use_cache:
                logits = cache[0][j - nv].astype(jnp.float32)
            else:
                logits = logits_tile()
            o_ref[...] = (logits - m_scr[...]).astype(o_ref.dtype)

    return kernel


def prepare_generator_params(weight, bias, *, mxu_dtype=jnp.bfloat16):
    """One-time prep of nn.Linear(d_model, vocab) parameters.

    weight: (vocab, d_model), bias: (vocab,).
    Returns w_p: (d_model, vocab_p) in mxu_dtype (MXU-native RHS layout) and
    b_p: (1, vocab_p) f32 whose padded lanes hold -1e30 so they vanish from
    the logsumexp. Call once and reuse across forwards (avoids per-call
    pad/cast/transpose HBM round trips of the full LM-head weight).
    """
    vocab, _d_model = weight.shape
    vocab_p = _round_up(vocab, 128)
    w_pad = jnp.pad(weight, ((0, vocab_p - vocab), (0, 0)))
    w_p = jnp.asarray(w_pad.T, dtype=mxu_dtype)           # (d_model, vocab_p)
    b_p = jnp.pad(bias.astype(jnp.float32), (0, vocab_p - vocab),
                  constant_values=-1e30).reshape(1, vocab_p)
    return w_p, b_p


def generator_apply(x, w_p, b_p, vocab, *, tm_max=None, tn_max=None,
                    allow_cache=True):
    """log_softmax(x @ W^T + b, axis=-1) with prepared (w_p, b_p)."""
    orig_shape = x.shape
    d_model = orig_shape[-1]
    dm_w, vocab_p = w_p.shape
    assert dm_w == d_model, "weight/input d_model mismatch"
    out_dtype = x.dtype
    mxu_dtype = w_p.dtype

    n_rows = 1
    for s in orig_shape[:-1]:
        n_rows *= s
    x2d = x.reshape(n_rows, d_model)

    tm, tn, cache_dtype, vmem_limit = _select_config(
        n_rows, d_model, vocab_p,
        jnp.dtype(out_dtype).itemsize, jnp.dtype(mxu_dtype).itemsize,
        tm_max=tm_max, tn_max=tn_max, allow_cache=allow_cache)
    use_cache = cache_dtype is not None

    rows_p = _round_up(n_rows, tm)
    nr = rows_p // tm
    nv = vocab_p // tn

    x_pad = x2d if rows_p == n_rows else jnp.pad(
        x2d, ((0, rows_p - n_rows), (0, 0)))
    x_pad = x_pad.astype(mxu_dtype)

    if use_cache:
        # Park weight/bias at the last vocab tile during phase 1: no re-DMA.
        w_map = lambda i, j: (0, jnp.minimum(j, nv - 1))
        b_map = lambda i, j: (0, jnp.minimum(j, nv - 1))
    else:
        w_map = lambda i, j: (0, jnp.where(j < nv, j, j - nv))
        b_map = w_map
    # Output block stays parked at column 0 through phase 0 (never flushed
    # unwritten); each block is written exactly once in phase 1.
    out_map = lambda i, j: (i, jnp.where(j < nv, 0, j - nv))

    scratch = [
        pltpu.VMEM((tm, 1), jnp.float32),   # running max -> logsumexp
        pltpu.VMEM((tm, 1), jnp.float32),   # running sum of exp
    ]
    if use_cache:
        scratch.append(pltpu.VMEM((nv, tm, tn), cache_dtype))

    mxu_passes = 1 if use_cache else 2
    itm = jnp.dtype(mxu_dtype).itemsize
    cost = pl.CostEstimate(
        flops=2 * mxu_passes * rows_p * d_model * vocab_p,
        transcendentals=rows_p * vocab_p + rows_p * nv,
        bytes_accessed=(rows_p * d_model * itm
                        + mxu_passes * nr * vocab_p * d_model * itm
                        + nr * vocab_p * 4
                        + rows_p * vocab_p * jnp.dtype(out_dtype).itemsize),
    )

    kernel = _make_generator_kernel(nv=nv, use_cache=use_cache)

    out_p = pl.pallas_call(
        kernel,
        out_shape=jax.ShapeDtypeStruct((rows_p, vocab_p), out_dtype),
        grid_spec=pltpu.PrefetchScalarGridSpec(
            num_scalar_prefetch=0,
            grid=(nr, 2 * nv),
            in_specs=[
                pl.BlockSpec((tm, d_model), lambda i, j: (i, 0)),
                pl.BlockSpec((d_model, tn), w_map),
                pl.BlockSpec((1, tn), b_map),
            ],
            out_specs=pl.BlockSpec((tm, tn), out_map),
            scratch_shapes=scratch,
        ),
        compiler_params=pltpu.CompilerParams(
            dimension_semantics=("parallel", "arbitrary"),
            vmem_limit_bytes=vmem_limit,
        ),
        cost_estimate=cost,
    )(x_pad, w_p, b_p)

    out = out_p
    if rows_p != n_rows or vocab_p != vocab:
        out = out[:n_rows, :vocab]
    return out.reshape(*orig_shape[:-1], vocab)


def generator_forward(x, weight, bias, *, mxu_dtype=jnp.bfloat16, **kwargs):
    """Drop-in equivalent of Generator.forward (param prep not hoisted)."""
    w_p, b_p = prepare_generator_params(weight, bias, mxu_dtype=mxu_dtype)
    return generator_apply(x, w_p, b_p, weight.shape[0], **kwargs)


if __name__ == "__main__":
    def reference(x, weight, bias, mxu_dtype=jnp.bfloat16):
        # Same bf16 MXU operands / f32 accumulation as the kernel.
        logits = jax.lax.dot_general(
            x.astype(mxu_dtype), weight.astype(mxu_dtype),
            dimension_numbers=(((x.ndim - 1,), (1,)), ((), ())),
            preferred_element_type=jnp.float32,
        ) + bias.astype(jnp.float32)
        return jax.nn.log_softmax(logits, axis=-1).astype(x.dtype)

    key = jax.random.PRNGKey(0)

    # Case 1: aligned shapes (no padding anywhere), hoisted prep + jit.
    batch, seq, d_model, vocab = 2, 8, 32, 128
    k1, k2, k3, key = jax.random.split(key, 4)
    x = jax.random.normal(k1, (batch, seq, d_model), dtype=jnp.float32)
    weight = jax.random.normal(k2, (vocab, d_model), dtype=jnp.float32) * 0.02
    bias = jax.random.normal(k3, (vocab,), dtype=jnp.float32) * 0.02

    w_p, b_p = prepare_generator_params(weight, bias)   # one-time weight prep
    apply_jit = jax.jit(generator_apply, static_argnums=(3,))
    out = jax.block_until_ready(apply_jit(x, w_p, b_p, vocab))
    ref = reference(x, weight, bias)
    assert out.shape == (batch, seq, vocab)
    assert jnp.allclose(out, ref, atol=2e-4, rtol=2e-4), (
        float(jnp.max(jnp.abs(out - ref))))

    # Case 2: unaligned rows/vocab + multi-tile vocab (nv=2) with the VMEM
    # logits cache; exercises the pad + slice path and the phase boundary.
    batch2, seq2, d_model2, vocab2 = 2, 5, 48, 200
    k1, k2, k3, key = jax.random.split(key, 4)
    x2 = jax.random.normal(k1, (batch2, seq2, d_model2), dtype=jnp.float32)
    weight2 = jax.random.normal(k2, (vocab2, d_model2), dtype=jnp.float32) * 0.02
    bias2 = jax.random.normal(k3, (vocab2,), dtype=jnp.float32) * 0.02

    out2 = jax.block_until_ready(
        generator_forward(x2, weight2, bias2, tm_max=8, tn_max=128))
    ref2 = reference(x2, weight2, bias2)
    assert out2.shape == (batch2, seq2, vocab2)
    assert jnp.allclose(out2, ref2, atol=2e-4, rtol=2e-4), (
        float(jnp.max(jnp.abs(out2 - ref2))))

    # Case 3: same shapes, cache disabled -> 2-pass recompute fallback path.
    out3 = jax.block_until_ready(
        generator_forward(x2, weight2, bias2, tm_max=8, tn_max=128,
                          allow_cache=False))
    assert jnp.allclose(out3, ref2, atol=2e-4, rtol=2e-4), (
        float(jnp.max(jnp.abs(out3 - ref2))))

    print("KERNEL_OK")
</pallas_src>

<mosaic_0001>
module attributes {stable_mosaic.version = 11 : i64} {
  func.func @kernel(%arg0: i32, %arg1: i32, %arg2: memref<8x32xbf16, #tpu.memory_space<vmem>>, %arg3: memref<32x128xbf16, #tpu.memory_space<vmem>>, %arg4: memref<1x128xf32, #tpu.memory_space<vmem>>, %arg5: memref<8x128xf32, #tpu.memory_space<vmem>>, %arg6: memref<8x1xf32, #tpu.memory_space<vmem>>, %arg7: memref<8x1xf32, #tpu.memory_space<vmem>>, %arg8: memref<1x8x128xf32, #tpu.memory_space<vmem>>) attributes {dimension_semantics = [#tpu.dimension_semantics<parallel>, #tpu.dimension_semantics<arbitrary>], iteration_bounds = array<i64: 2, 2>, scalar_prefetch = 0 : i64, scratch_operands = 3 : i64, tpu.core_type = #tpu.core_type<tc>, window_params = [{transform_indices = @transform_0, window_bounds = array<i64: 8, 32>}, {transform_indices = @transform_1, window_bounds = array<i64: 32, 128>}, {transform_indices = @transform_2, window_bounds = array<i64: 1, 128>}, {transform_indices = @transform_3, window_bounds = array<i64: 8, 128>}]} {
    %c0_i32 = arith.constant 0 : i32
    %0 = arith.cmpi eq, %arg1, %c0_i32 : i32
    %1 = arith.extui %0 : i1 to i32
    %c0_i32_0 = arith.constant 0 : i32
    %2 = arith.cmpi ne, %1, %c0_i32_0 : i32
    scf.if %2 {
      %cst = arith.constant 0xFF800000 : f32
      %12 = vector.broadcast %cst : f32 to vector<8x1xf32>
      %c0 = arith.constant 0 : index
      %c0_6 = arith.constant 0 : index
      %13 = vector.load %arg6[%c0, %c0_6] : memref<8x1xf32, #tpu.memory_space<vmem>>, vector<8x1xf32>
      tpu.vector_store %arg6[%c0, %c0_6], %12 {strides = array<i32>} : memref<8x1xf32, #tpu.memory_space<vmem>>, vector<8x1xf32>,
      %cst_7 = arith.constant 0.000000e+00 : f32
      %14 = vector.broadcast %cst_7 : f32 to vector<8x1xf32>
      %c0_8 = arith.constant 0 : index
      %c0_9 = arith.constant 0 : index
      %15 = vector.load %arg7[%c0_8, %c0_9] : memref<8x1xf32, #tpu.memory_space<vmem>>, vector<8x1xf32>
      tpu.vector_store %arg7[%c0_8, %c0_9], %14 {strides = array<i32>} : memref<8x1xf32, #tpu.memory_space<vmem>>, vector<8x1xf32>,
    } else {
    }
    %c1_i32 = arith.constant 1 : i32
    %3 = arith.cmpi slt, %arg1, %c1_i32 : i32
    %4 = arith.extui %3 : i1 to i32
    %c0_i32_1 = arith.constant 0 : i32
    %5 = arith.cmpi ne, %4, %c0_i32_1 : i32
    scf.if %5 {
      %c0 = arith.constant 0 : index
      %c0_6 = arith.constant 0 : index
      %12 = vector.load %arg2[%c0, %c0_6] : memref<8x32xbf16, #tpu.memory_space<vmem>>, vector<8x32xbf16>
      %c0_7 = arith.constant 0 : index
      %c0_8 = arith.constant 0 : index
      %13 = vector.load %arg3[%c0_7, %c0_8] : memref<32x128xbf16, #tpu.memory_space<vmem>>, vector<32x128xbf16>
      %cst = arith.constant dense<0.000000e+00> : vector<8x128xf32>
      %14 = tpu.matmul %12, %13, %cst {dimension_numbers = #tpu.dot_dimension_numbers<[1], [0], [0], [1], [0, 0, 1, 1], [], []>} : vector<8x32xbf16>, vector<32x128xbf16>, vector<8x128xf32> -> vector<8x128xf32>
      %c0_9 = arith.constant 0 : index
      %c0_10 = arith.constant 0 : index
      %15 = vector.load %arg4[%c0_9, %c0_10] : memref<1x128xf32, #tpu.memory_space<vmem>>, vector<1x128xf32>
      %16 = vector.broadcast %15 : vector<1x128xf32> to vector<8x128xf32>
      %17 = arith.addf %14, %16 : vector<8x128xf32>
      %18 = arith.index_cast %arg1 : i32 to index
      %c0_11 = arith.constant 0 : index
      %c0_12 = arith.constant 0 : index
      %19 = vector.load %arg8[%18, %c0_11, %c0_12] : memref<1x8x128xf32, #tpu.memory_space<vmem>>, vector<1x8x128xf32>
      %20 = vector.shape_cast %19 : vector<1x8x128xf32> to vector<8x128xf32>
      %21 = vector.shape_cast %17 : vector<8x128xf32> to vector<1x8x128xf32>
      tpu.vector_store %arg8[%18, %c0_11, %c0_12], %21 {strides = array<i32>} : memref<1x8x128xf32, #tpu.memory_space<vmem>>, vector<1x8x128xf32>,
      %c0_13 = arith.constant 0 : index
      %c0_14 = arith.constant 0 : index
      %22 = vector.load %arg6[%c0_13, %c0_14] : memref<8x1xf32, #tpu.memory_space<vmem>>, vector<8x1xf32>
      %cst_15 = arith.constant dense<0xFF800000> : vector<8xf32>
      %23 = vector.multi_reduction <maximumf>, %17, %cst_15 [1] : vector<8x128xf32> to vector<8xf32>
      %24 = vector.shape_cast %23 : vector<8xf32> to vector<8x1xf32>
      %25 = arith.maximumf %22, %24 : vector<8x1xf32>
      %c0_16 = arith.constant 0 : index
      %c0_17 = arith.constant 0 : index
      %26 = vector.load %arg7[%c0_16, %c0_17] : memref<8x1xf32, #tpu.memory_space<vmem>>, vector<8x1xf32>
      %27 = arith.subf %22, %25 : vector<8x1xf32>
      %28 = math.exp %27 : vector<8x1xf32>
      %29 = arith.mulf %26, %28 : vector<8x1xf32>
      %30 = vector.broadcast %25 : vector<8x1xf32> to vector<8x128xf32>
      %31 = arith.subf %17, %30 : vector<8x128xf32>
      %32 = math.exp %31 : vector<8x128xf32>
      %cst_18 = arith.constant dense<0.000000e+00> : vector<8xf32>
      %33 = vector.multi_reduction <add>, %32, %cst_18 [1] : vector<8x128xf32> to vector<8xf32>
      %34 = vector.shape_cast %33 : vector<8xf32> to vector<8x1xf32>
      %35 = arith.addf %29, %34 : vector<8x1xf32>
      %c0_19 = arith.constant 0 : index
      %c0_20 = arith.constant 0 : index
      %36 = vector.load %arg7[%c0_19, %c0_20] : memref<8x1xf32, #tpu.memory_space<vmem>>, vector<8x1xf32>
      tpu.vector_store %arg7[%c0_19, %c0_20], %35 {strides = array<i32>} : memref<8x1xf32, #tpu.memory_space<vmem>>, vector<8x1xf32>,
      %c0_21 = arith.constant 0 : index
      %c0_22 = arith.constant 0 : index
      %37 = vector.load %arg6[%c0_21, %c0_22] : memref<8x1xf32, #tpu.memory_space<vmem>>, vector<8x1xf32>
      tpu.vector_store %arg6[%c0_21, %c0_22], %25 {strides = array<i32>} : memref<8x1xf32, #tpu.memory_space<vmem>>, vector<8x1xf32>,
    } else {
    }
    %c1_i32_2 = arith.constant 1 : i32
    %6 = arith.cmpi eq, %arg1, %c1_i32_2 : i32
    %7 = arith.extui %6 : i1 to i32
    %c0_i32_3 = arith.constant 0 : i32
    %8 = arith.cmpi ne, %7, %c0_i32_3 : i32
    scf.if %8 {
      %c0 = arith.constant 0 : index
      %c0_6 = arith.constant 0 : index
      %12 = vector.load %arg6[%c0, %c0_6] : memref<8x1xf32, #tpu.memory_space<vmem>>, vector<8x1xf32>
      %c0_7 = arith.constant 0 : index
      %c0_8 = arith.constant 0 : index
      %13 = vector.load %arg7[%c0_7, %c0_8] : memref<8x1xf32, #tpu.memory_space<vmem>>, vector<8x1xf32>
      %14 = math.log %13 : vector<8x1xf32>
      %15 = arith.addf %12, %14 : vector<8x1xf32>
      %c0_9 = arith.constant 0 : index
      %c0_10 = arith.constant 0 : index
      %16 = vector.load %arg6[%c0_9, %c0_10] : memref<8x1xf32, #tpu.memory_space<vmem>>, vector<8x1xf32>
      tpu.vector_store %arg6[%c0_9, %c0_10], %15 {strides = array<i32>} : memref<8x1xf32, #tpu.memory_space<vmem>>, vector<8x1xf32>,
    } else {
    }
    %c1_i32_4 = arith.constant 1 : i32
    %9 = arith.cmpi sge, %arg1, %c1_i32_4 : i32
    %10 = arith.extui %9 : i1 to i32
    %c0_i32_5 = arith.constant 0 : i32
    %11 = arith.cmpi ne, %10, %c0_i32_5 : i32
    scf.if %11 {
      %c1_i32_6 = arith.constant 1 : i32
      %12 = arith.subi %arg1, %c1_i32_6 : i32
      %13 = arith.index_cast %12 : i32 to index
      %c0 = arith.constant 0 : index
      %c0_7 = arith.constant 0 : index
      %14 = vector.load %arg8[%13, %c0, %c0_7] : memref<1x8x128xf32, #tpu.memory_space<vmem>>, vector<1x8x128xf32>
      %15 = vector.shape_cast %14 : vector<1x8x128xf32> to vector<8x128xf32>
      %c0_8 = arith.constant 0 : index
      %c0_9 = arith.constant 0 : index
      %16 = vector.load %arg6[%c0_8, %c0_9] : memref<8x1xf32, #tpu.memory_space<vmem>>, vector<8x1xf32>
      %17 = vector.broadcast %16 : vector<8x1xf32> to vector<8x128xf32>
      %18 = arith.subf %15, %17 : vector<8x128xf32>
      %c0_10 = arith.constant 0 : index
      %c0_11 = arith.constant 0 : index
      %19 = vector.load %arg5[%c0_10, %c0_11] : memref<8x128xf32, #tpu.memory_space<vmem>>, vector<8x128xf32>
      tpu.vector_store %arg5[%c0_10, %c0_11], %18 {strides = array<i32>} : memref<8x128xf32, #tpu.memory_space<vmem>>, vector<8x128xf32>,
    } else {
    }
    return
  }
  func.func @transform_0(%arg0: i32, %arg1: i32) -> (i32, i32) {
    %c0_i32 = arith.constant 0 : i32
    %c0_i32_0 = arith.constant 0 : i32
    return %arg0, %c0_i32 : i32, i32
  }
  func.func @transform_1(%arg0: i32, %arg1: i32) -> (i32, i32) {
    %c0_i32 = arith.constant 0 : i32
    %0 = arith.minsi %arg1, %c0_i32 : i32
    %c0_i32_0 = arith.constant 0 : i32
    %c0_i32_1 = arith.constant 0 : i32
    return %c0_i32_0, %0 : i32, i32
  }
  func.func @transform_2(%arg0: i32, %arg1: i32) -> (i32, i32) {
    %c0_i32 = arith.constant 0 : i32
    %0 = arith.minsi %arg1, %c0_i32 : i32
    %c0_i32_0 = arith.constant 0 : i32
    %c0_i32_1 = arith.constant 0 : i32
    return %c0_i32_0, %0 : i32, i32
  }
  func.func @transform_3(%arg0: i32, %arg1: i32) -> (i32, i32) {
    %c1_i32 = arith.constant 1 : i32
    %0 = arith.cmpi slt, %arg1, %c1_i32 : i32
    %c1_i32_0 = arith.constant 1 : i32
    %1 = arith.subi %arg1, %c1_i32_0 : i32
    %c0_i32 = arith.constant 0 : i32
    %2 = arith.select %0, %c0_i32, %1 : i32
    %c0_i32_1 = arith.constant 0 : i32
    return %arg0, %2 : i32, i32
  }
}

</mosaic_0001>

<llo_original>
// kernel: generator_apply.1
$region0: #{generator_apply.1}
  #allocation0 [shape = 'u32[]', space=smem, size = 0x4, offset = 0x4, fixed_abs, tag = 'smem constant byte address 0x4 - core index']
  #allocation1 [shape = 'u32[144,128]{1,0:T(1,128)}', space=vmem, size = 0x12000, scoped, tag = 'internal scratch']
  #allocation2 [shape = 'f32[8,1]{1,0:T(8,128)}', space=vmem, size = 0x1000, scoped, tag = 'scratch operand']
  #allocation3 [shape = 'f32[8,1]{1,0:T(8,128)}', space=vmem, size = 0x1000, scoped, tag = 'scratch operand']
  #allocation4 [shape = 'f32[1,8,128]{2,1,0:T(8,128)}', space=vmem, size = 0x1000, scoped, tag = 'scratch operand']
  %s0 = inlined_call_operand.vmem [shape: bf16[16,32], index: 0, kind: input, shape index: {}]
  %s1 = inlined_call_operand.vmem [shape: bf16[32,128], index: 1, kind: input, shape index: {}]
  %s2 = inlined_call_operand.vmem [shape: f32[1,128], index: 2, kind: input, shape index: {}]
  %s3 = inlined_call_operand.hbm [shape: f32[16,128], index: 3, kind: output, shape index: {}]
  %s4 = sld [smem:[#allocation0]]
  $region61: #{generator_apply.1} parent=0
    _
  %s6 = ssub.s32 1, %s4
  %s7 = scalar_select 0, %s6, %s4
  $region1: #{generator_apply.1} parent=0
    #allocation5 [shape = 'u8[8192]{0}', space=vmem, size = 0x2000, scoped, tag = 'output window, operand 0']
    #allocation6 [shape = 's32[2]{0}', space=sflag, size = 0x8, scoped, tag = 'scoped memory for generator_apply.1']
    %8 = vsyncpa [#allocation6], 0
    %s9 = scalar_lea.sflag [#allocation6], 1
    %10 = vsyncpa %s9, 0
    loop: start=0, step=1, limit=6
    $region2: #{generator_apply.1} parent=1 // loop_pre_header
      _
    $region3: #{generator_apply.1} parent=1 // loop_header
      %s12 = sphi 0, %s16
      %p13 = scmp.ge.s32.totalorder %s12, 6
      %s19 = sphi 0, %s31
      %s20 = sphi 0, %s27
      %s21 = sphi 0, %s19
      %s22 = sphi 0, %s20
      %s23 = sphi 0, %s21
      %s24 = sphi 0, %s22
      %s34 = sphi 0, %s36
      %s37 = sphi 0, %s34
      %s38 = sphi 0, %s37
      %s54 = sphi 0, %s38
      %s64 = sphi 0, %s66
      %s67 = sphi 0, %s64
      %s68 = sphi 0, %s67
      %s84 = sphi 0, %s68
      %s94 = sphi 0, %s96
      %s97 = sphi 0, %s94
      %s98 = sphi 0, %s97
      %s114 = sphi 0, %s98
      %s128 = sphi 0, %s130
      %s131 = sphi 0, %s128
      %s132 = sphi 0, %s131
      %s148 = sphi 0, %s132
    $region4: #{generator_apply.1} parent=1 // loop_header_branch
      %15 = sbr.rel (%p13) target = $region8
    $region5: #{generator_apply.1} parent=1 // loop_body
      %s17 = ssub.s32 %s12, 1
      %s18 = ssub.s32 %s12, 2
      %s25 = sadd.s32 1, %s20
      %p26 = scmp.ge.s32.totalorder %s25, 2
      %s27 = scalar_select %p26, 0, %s25
      %s28 = sadd.s32 1, %s19
      %s29 = scalar_select %p26, %s28, %s19
      %p30 = scmp.ge.s32.totalorder %s29, 2
      %s31 = scalar_select %p30, 0, %s29
      %s32 = ssub.s32 %s19, %s31
      %p33 = scmp.eq.s32.totalorder %s32, 0
      %s35 = sadd.s32 %s34, 1
      %s36 = scalar_select %p33, %s34, %s35
      %p39 = pneg %p33
      %p40 = scmp.eq.s32.totalorder %s12, 3
      %p41 = por %p39, %p40
      %p42 = scmp.ne.s32.totalorder %s34, %s37
      %p43 = scmp.eq.s32.totalorder %s12, 0
      %p44 = por %p42, %p43
      %p45 = scmp.ne.s32.totalorder %s34, %s37
      %p46 = scmp.eq.s32.totalorder %s17, 3
      %p47 = por %p45, %p46
      %p48 = scmp.ne.s32.totalorder %s37, %s38
      %p49 = scmp.eq.s32.totalorder %s17, 0
      %p50 = por %p48, %p49
      %p51 = scmp.ne.s32.totalorder %s37, %s38
      %p52 = scmp.eq.s32.totalorder %s18, 3
      %p53 = por %p51, %p52
      %p55 = scmp.ne.s32.totalorder %s38, %s54
      %p56 = scmp.eq.s32.totalorder %s18, 0
      %p57 = por %p55, %p56
      %p58 = scmp.lt.s32.totalorder %s20, 0
      %s59 = scalar_select %p58, %s20, 0
      %p60 = scmp.lt.s32.totalorder %s27, 0
      %s61 = scalar_select %p60, %s27, 0
      %s62 = ssub.s32 %s59, %s61
      %p63 = scmp.eq.s32.totalorder %s62, 0
      %s65 = sadd.s32 %s64, 1
      %s66 = scalar_select %p63, %s64, %s65
      %p69 = pneg %p63
      %p70 = scmp.eq.s32.totalorder %s12, 3
      %p71 = por %p69, %p70
      %p72 = scmp.ne.s32.totalorder %s64, %s67
      %p73 = scmp.eq.s32.totalorder %s12, 0
      %p74 = por %p72, %p73
      %p75 = scmp.ne.s32.totalorder %s64, %s67
      %p76 = scmp.eq.s32.totalorder %s17, 3
      %p77 = por %p75, %p76
      %p78 = scmp.ne.s32.totalorder %s67, %s68
      %p79 = scmp.eq.s32.totalorder %s17, 0
      %p80 = por %p78, %p79
      %p81 = scmp.ne.s32.totalorder %s67, %s68
      %p82 = scmp.eq.s32.totalorder %s18, 3
      %p83 = por %p81, %p82
      %p85 = scmp.ne.s32.totalorder %s68, %s84
      %p86 = scmp.eq.s32.totalorder %s18, 0
      %p87 = por %p85, %p86
      %p88 = scmp.lt.s32.totalorder %s20, 0
      %s89 = scalar_select %p88, %s20, 0
      %p90 = scmp.lt.s32.totalorder %s27, 0
      %s91 = scalar_select %p90, %s27, 0
      %s92 = ssub.s32 %s89, %s91
      %p93 = scmp.eq.s32.totalorder %s92, 0
      %s95 = sadd.s32 %s94, 1
      %s96 = scalar_select %p93, %s94, %s95
      %p99 = pneg %p93
      %p100 = scmp.eq.s32.totalorder %s12, 3
      %p101 = por %p99, %p100
      %p102 = scmp.ne.s32.totalorder %s94, %s97
      %p103 = scmp.eq.s32.totalorder %s12, 0
      %p104 = por %p102, %p103
      %p105 = scmp.ne.s32.totalorder %s94, %s97
      %p106 = scmp.eq.s32.totalorder %s17, 3
      %p107 = por %p105, %p106
      %p108 = scmp.ne.s32.totalorder %s97, %s98
      %p109 = scmp.eq.s32.totalorder %s17, 0
      %p110 = por %p108, %p109
      %p111 = scmp.ne.s32.totalorder %s97, %s98
      %p112 = scmp.eq.s32.totalorder %s18, 3
      %p113 = por %p111, %p112
      %p115 = scmp.ne.s32.totalorder %s98, %s114
      %p116 = scmp.eq.s32.totalorder %s18, 0
      %p117 = por %p115, %p116
      %p118 = scmp.lt.s32.totalorder %s20, 1
      %s119 = ssub.s32 %s20, 1
      %s120 = scalar_select %p118, 0, %s119
      %p121 = scmp.lt.s32.totalorder %s27, 1
      %s122 = ssub.s32 %s27, 1
      %s123 = scalar_select %p121, 0, %s122
      %s124 = ssub.s32 %s19, %s31
      %s125 = ssub.s32 %s120, %s123
      %s126 = sor.u32 %s124, %s125
      %p127 = scmp.eq.s32.totalorder %s126, 0
      %s129 = sadd.s32 %s128, 1
      %s130 = scalar_select %p127, %s128, %s129
      %p133 = pneg %p127
      %p134 = scmp.eq.s32.totalorder %s12, 3
      %p135 = por %p133, %p134
      %p136 = scmp.ne.s32.totalorder %s128, %s131
      %p137 = scmp.eq.s32.totalorder %s12, 0
      %p138 = por %p136, %p137
      %p139 = scmp.ne.s32.totalorder %s128, %s131
      %p140 = scmp.eq.s32.totalorder %s17, 3
      %p141 = por %p139, %p140
      %p142 = scmp.ne.s32.totalorder %s131, %s132
      %p143 = scmp.eq.s32.totalorder %s17, 0
      %p144 = por %p142, %p143
      %p145 = scmp.ne.s32.totalorder %s131, %s132
      %p146 = scmp.eq.s32.totalorder %s18, 3
      %p147 = por %p145, %p146
      %p149 = scmp.ne.s32.totalorder %s132, %s148
      %p150 = scmp.eq.s32.totalorder %s18, 0
      %p151 = por %p149, %p150
      %p152 = scmp.le.s32.totalorder 1, %s12
      %p153 = scmp.lt.s32.totalorder %s12, 5
      %p154 = pnand %p152, %p153
      %p155 = pneg %p154
      // Predicated region
      $region9: #{generator_apply.1} parent=5 // pred_check
        _
      $region10: #{generator_apply.1} parent=5 // pred_check_branch
        %157 = sbr.rel (%p154) target = $region12
      $region11: #{generator_apply.1} parent=5 // pred_region
        %s158 = ssub.s32 %s12, 1
      $region12: #{generator_apply.1} parent=5 // pred_fallthru
        _
      %p159 = scmp.lt.s32.totalorder %s12, 4
      // Predicated region
      $region13: #{generator_apply.1} parent=5 // pred_check
        %p160 = pneg %p159
      $region14: #{generator_apply.1} parent=5 // pred_check_branch
        %162 = sbr.rel (%p160) target = $region16
      $region15: #{generator_apply.1} parent=5 // pred_region
        // Predicated region
        $region17: #{generator_apply.1} parent=15 // pred_check
          %p163 = pneg %p44
        $region18: #{generator_apply.1} parent=15 // pred_check_branch
          %165 = sbr.rel (%p163) target = $region20
        $region19: #{generator_apply.1} parent=15 // pred_region
          %p166 = scmp.lt.s32.totalorder %s19, 1
          %s167 = scalar_select %p166, %s19, 1
          %s168 = smul.addr %s167, 4
          %s169 = scalar_lea.vmem %s0, %s168
        $region20: #{generator_apply.1} parent=15 // pred_fallthru
          _
        // Predicated region
        $region21: #{generator_apply.1} parent=15 // pred_check
          %p170 = pneg %p74
        $region22: #{generator_apply.1} parent=15 // pred_check_branch
          %172 = sbr.rel (%p170) target = $region24
        $region23: #{generator_apply.1} parent=15 // pred_region
          %p173 = scmp.lt.s32.totalorder %s20, 0
          %s174 = scalar_select %p173, %s20, 0
          %p175 = scmp.lt.s32.totalorder %s174, 0
          %s176 = scalar_select %p175, %s174, 0
          %s177 = smul.addr %s176, 4
          %s178 = scalar_lea.vmem %s1, %s177
          %p179 = scmp.lt.s32.totalorder %s20, 0
          %s180 = scalar_select %p179, %s20, 0
        $region24: #{generator_apply.1} parent=15 // pred_fallthru
          _
        // Predicated region
        $region25: #{generator_apply.1} parent=15 // pred_check
          %p181 = pneg %p104
        $region26: #{generator_apply.1} parent=15 // pred_check_branch
          %183 = sbr.rel (%p181) target = $region28
        $region27: #{generator_apply.1} parent=15 // pred_region
          %p184 = scmp.lt.s32.totalorder %s20, 0
          %s185 = scalar_select %p184, %s20, 0
          %p186 = scmp.lt.s32.totalorder %s185, 0
          %s187 = scalar_select %p186, %s185, 0
          %s188 = scalar_lea.vmem %s2, %s187
          %p189 = scmp.lt.s32.totalorder %s20, 0
          %s190 = scalar_select %p189, %s20, 0
        $region28: #{generator_apply.1} parent=15 // pred_fallthru
          _
      $region16: #{generator_apply.1} parent=5 // pred_fallthru
        _
      %p191 = scmp.le.s32.totalorder 1, %s12
      %p192 = scmp.lt.s32.totalorder %s12, 5
      %p193 = pnand %p191, %p192
      %p194 = pneg %p193
      // Predicated region
      $region29: #{generator_apply.1} parent=5 // pred_check
        _
      $region30: #{generator_apply.1} parent=5 // pred_check_branch
        %196 = sbr.rel (%p193) target = $region32
      $region31: #{generator_apply.1} parent=5 // pred_region
        %s197 = ssub.s32 %s12, 1
        %p198 = scmp.lt.s32.totalorder %s21, 1
        %s199 = scalar_select %p198, %s21, 1
        %s200 = smul.addr %s199, 4
        %s201 = scalar_lea.vmem %s0, %s200
        %p202 = pneg %p50
        %p203 = pneg %p47
        %p204 = scmp.lt.s32.totalorder %s22, 0
        %s205 = scalar_select %p204, %s22, 0
        %p206 = scmp.lt.s32.totalorder %s205, 0
        %s207 = scalar_select %p206, %s205, 0
        %s208 = smul.addr %s207, 4
        %s209 = scalar_lea.vmem %s1, %s208
        %p210 = pneg %p80
        %p211 = pneg %p77
        %p212 = scmp.lt.s32.totalorder %s22, 0
        %s213 = scalar_select %p212, %s22, 0
        %p214 = scmp.lt.s32.totalorder %s213, 0
        %s215 = scalar_select %p214, %s213, 0
        %s216 = scalar_lea.vmem %s2, %s215
        %p217 = pneg %p110
        %p218 = pneg %p107
        %p219 = pneg %p144
        %p220 = pneg %p141
        %s221 = sand.u32 %s131, 1
        %s222 = scalar_lea.sflag [#allocation6], %s221
        %s223 = sand.u32 %s131, 1
        %s224 = smul.addr %s223, 8
        %s225 = scalar_lea.vmem [#allocation5], %s224
        %p226 = scmp.lt.s32.totalorder %s21, 1
        %s227 = scalar_select %p226, %s21, 1
        %s228 = smul.addr %s227, 4
        %s229 = scalar_lea.vmem %s0, %s228
        %p230 = scmp.lt.s32.totalorder %s22, 0
        %s231 = scalar_select %p230, %s22, 0
        %p232 = scmp.lt.s32.totalorder %s231, 0
        %s233 = scalar_select %p232, %s231, 0
        %s234 = smul.addr %s233, 4
        %s235 = scalar_lea.vmem %s1, %s234
        %p236 = scmp.lt.s32.totalorder %s22, 0
        %s237 = scalar_select %p236, %s22, 0
        %p238 = scmp.lt.s32.totalorder %s22, 0
        %s239 = scalar_select %p238, %s22, 0
        %p240 = scmp.lt.s32.totalorder %s239, 0
        %s241 = scalar_select %p240, %s239, 0
        %s242 = scalar_lea.vmem %s2, %s241
        %p243 = scmp.lt.s32.totalorder %s22, 0
        %s244 = scalar_select %p243, %s22, 0
        %p245 = scmp.lt.s32.totalorder %s22, 1
        %s246 = ssub.s32 %s22, 1
        %s247 = scalar_select %p245, 0, %s246
        %p249 = scmp.eq.s32.totalorder %s22, 0
        // Predicated region
        $region33: #{generator_apply.1} parent=31 // pred_check
          %p250 = pneg %p249
        $region34: #{generator_apply.1} parent=31 // pred_check_branch
          %252 = sbr.rel (%p250) target = $region36
        $region35: #{generator_apply.1} parent=31 // pred_region
          %vm253 = vcmask 7168
          %254 = vst.msk [vmem:[#allocation2] sm:$0xff] %vm253, -inf
          %255 = vst.msk [vmem:[#allocation3] sm:$0xff] %vm253, 0.0
        $region36: #{generator_apply.1} parent=31 // pred_fallthru
          _
        %p256 = scmp.lt.s32.totalorder %s22, 1
        // Predicated region
        $region37: #{generator_apply.1} parent=31 // pred_check
          %p257 = pneg %p256
        $region38: #{generator_apply.1} parent=31 // pred_check_branch
          %259 = sbr.rel (%p257) target = $region40
        $region39: #{generator_apply.1} parent=31 // pred_region
          %v260 = vld [vmem:[%s229] sm:$0xf]
          %v261 = vld [vmem:[%s235] sm:$0xf]
          %v262 = vld [vmem:[%s235 + $0x4] sm:$0xf]
          %v263 = vld [vmem:[%s235 + $0x8] sm:$0xf]
          %v264 = vld [vmem:[%s235 + $0xc] sm:$0xf]
          %v265 = vld [vmem:[%s242] sm:$0x1]
          %v267 = vlaneseq
          %v268 = vshrl.u32 %v267, 7
          %v269 = vsub.s32 0, %v268
          %v270 = vrot.slane %v265, %v269
          %v276 = vunpack.c.l.b16 %v261
          %v277 = vunpack.c.l.b16 %v262
          %v278 = vunpack.c.l.b16 %v263
          %v279 = vunpack.c.l.b16 %v264
          %v280 = vpack.c.b16 %v277, %v276
          %v281 = vpack.c.b16 %v279, %v278
          %vm284 = vcmask 261120
          %v286 = vsel %vm284, %v260, 0
          %288 = vmatprep.subr.bf16.mxu0 0
          %289 = vmatpush1.bf16.msra.mxu0 %v280
          %290 = vmatprep.subr.bf16.mxu0 0
          %291 = vmatpush1.bf16.msra.mxu0 %v281
          %292 = vmatprep.subr.bf16.mxu0 0
          %293 = vmatpush1.bf16.msra.mxu0 0
          %294 = vmatprep.subr.bf16.mxu0 0
          %295 = vmatpush1.bf16.msra.mxu0 0
          %296 = vmatprep.subr.bf16.mxu0 0
          %297 = vmatpush1.bf16.msra.mxu0 0
          %298 = vmatprep.subr.bf16.mxu0 0
          %299 = vmatpush1.bf16.msra.mxu0 0
          %300 = vmatprep.subr.bf16.mxu0 0
          %301 = vmatpush1.bf16.msra.mxu0 0
          %302 = vmatprep.subr.bf16.mxu0 0
          %303 = vmatpush1.bf16.msra.mxu0 0
          %304 = vmatprep.subr.bf16.mxu0 0
          %305 = vmatpush1.bf16.msra.mxu0 0
          %306 = vmatprep.subr.bf16.mxu0 0
          %307 = vmatpush1.bf16.msra.mxu0 0
          %308 = vmatprep.subr.bf16.mxu0 0
          %309 = vmatpush1.bf16.msra.mxu0 0
          %310 = vmatprep.subr.bf16.mxu0 0
          %311 = vmatpush1.bf16.msra.mxu0 0
          %312 = vmatprep.subr.bf16.mxu0 0
          %313 = vmatpush1.bf16.msra.mxu0 0
          %314 = vmatprep.subr.bf16.mxu0 0
          %315 = vmatpush1.bf16.msra.mxu0 0
          %316 = vmatprep.subr.bf16.mxu0 0
          %317 = vmatpush1.bf16.msra.mxu0 0
          %318 = vmatprep.subr.bf16.mxu0 0
          %319 = vmatpush1.bf16.msra.mxu0 0
          %320 = vmatprep.mubr.bf16.mxu0 0
          %321 = vmatmul.mubr.bf16.gmra.mrb[0].mxu0 %v286
          %v322 = vpop.f32.mrb[0].mxu0
          %v323 = vadd.f32 %v270, %v322
          %v324 = vpop.f32.mrb[0].mxu0
          %v325 = vpop.f32.mrb[0].mxu0
          %v326 = vpop.f32.mrb[0].mxu0
          %327 = vdwg.mxu0
          %s328 = smul.u32 %s22, 8
          %s329 = scalar_lea.vmem [#allocation4], %s328
          %330 = vst [vmem:[%s329] sm:$0xff] %v323
          %v331 = vld [vmem:[#allocation2] sm:$0xff]
          %332 = vmax.xlane.f32.xlu0 %v323
          %v333 = vpop.xlane.xlu0 %332
          %v334 = vmax.f32 %v331, %v333
          %v335 = vld [vmem:[#allocation3] sm:$0xff]
          %v336 = vsub.f32 %v331, %v334
          %v337 = vmul.f32 %v336, 1.442695
          %v338 = vpow.pop %v337
          %v339 = vmul.f32 %v335, %v338
          %341 = vset.pattern.permute.xlu0 0
          %342 = vperm.xlu0 %341, %v334
          %v343 = vpop.permute.xlu0 %342
          %v345 = vsub.f32 %v323, %v343
          %v346 = vmul.f32 %v345, 1.442695
          %v347 = vpow.pop %v346
          %348 = vadd.xlane.f32.xlu0 %v347
          %v349 = vpop.xlane.xlu0 %348
          %v350 = vadd.f32 %v339, %v349
          %vm351 = vcmask 7168
          %352 = vst.msk [vmem:[#allocation3] sm:$0xff] %vm351, %v350
          %353 = vst.msk [vmem:[#allocation2] sm:$0xff] %vm351, %v334
        $region40: #{generator_apply.1} parent=31 // pred_fallthru
          _
        %p354 = scmp.eq.s32.totalorder %s22, 1
        // Predicated region
        $region41: #{generator_apply.1} parent=31 // pred_check
          %p355 = pneg %p354
        $region42: #{generator_apply.1} parent=31 // pred_check_branch
          %357 = sbr.rel (%p355) target = $region44
        $region43: #{generator_apply.1} parent=31 // pred_region
          %v358 = vld [vmem:[#allocation2] sm:$0xff]
          %v359 = vld [vmem:[#allocation3] sm:$0xff]
          %v360 = vlog2.pop %v359
          %v361 = vmul.f32 %v360, 0.6931472
          %v362 = vadd.f32 %v358, %v361
          %vm363 = vcmask 7168
          %364 = vst.msk [vmem:[#allocation2] sm:$0xff] %vm363, %v362
        $region44: #{generator_apply.1} parent=31 // pred_fallthru
          _
        %p365 = scmp.ge.s32.totalorder %s22, 1
        // Predicated region
        $region45: #{generator_apply.1} parent=31 // pred_check
          %p366 = pneg %p365
        $region46: #{generator_apply.1} parent=31 // pred_check_branch
          %368 = sbr.rel (%p366) target = $region48
        $region47: #{generator_apply.1} parent=31 // pred_region
          %s369 = ssub.s32 %s22, 1
          %s370 = smul.u32 %s369, 8
          %s371 = scalar_lea.vmem [#allocation4], %s370
          %v372 = vld [vmem:[%s371] sm:$0xff]
          %v373 = vld [vmem:[#allocation2] sm:$0xff]
          %375 = vset.pattern.permute.xlu0 0
          %376 = vperm.xlu0 %375, %v373
          %v377 = vpop.permute.xlu0 %376
          %v379 = vsub.f32 %v372, %v377
          %380 = vst [vmem:[%s225] sm:$0xff] %v379
        $region48: #{generator_apply.1} parent=31 // pred_fallthru
          _
        %s381 = sand.u32 %s131, 1
        %s382 = scalar_lea.sflag [#allocation6], %s381
        %s383 = sand.u32 %s131, 1
        %s384 = smul.addr %s383, 8
        %s385 = scalar_lea.vmem [#allocation5], %s384
        // Predicated region
        $region49: #{generator_apply.1} parent=31 // pred_check
          %p386 = pneg %p141
        $region50: #{generator_apply.1} parent=31 // pred_check_branch
          %388 = sbr.rel (%p386) target = $region52
        $region51: #{generator_apply.1} parent=31 // pred_region
          %p389 = scmp.lt.s32.totalorder %s22, 1
          %s390 = ssub.s32 %s22, 1
          %s391 = scalar_select %p389, 0, %s390
          %s393 = ssub.s32 128, 128
          %394 = vsyncadd %s382, %s393
          %s395 = sadd.s32 %s391, %s21
          %s396 = smul.addr %s395, 128
          %s397 = scalar_lea.hbm %s3, %s396
          %s399 = sshll.u32 %s385, 4
          %s400 = int_to_ptr.vmem [resolvable:$true] %s399
          %402 = dma.vmem_to_hbm [thread:$0]  %s400, 128, %s397, %s382
        $region52: #{generator_apply.1} parent=31 // pred_fallthru
          _
      $region32: #{generator_apply.1} parent=5 // pred_fallthru
        _
      %p403 = scmp.le.s32.totalorder 2, %s12
      // Predicated region
      $region53: #{generator_apply.1} parent=5 // pred_check
        %p404 = pneg %p403
      $region54: #{generator_apply.1} parent=5 // pred_check_branch
        %406 = sbr.rel (%p404) target = $region56
      $region55: #{generator_apply.1} parent=5 // pred_region
        %s407 = ssub.s32 %s12, 2
        // Predicated region
        $region57: #{generator_apply.1} parent=55 // pred_check
          %p408 = pneg %p147
        $region58: #{generator_apply.1} parent=55 // pred_check_branch
          %410 = sbr.rel (%p408) target = $region60
        $region59: #{generator_apply.1} parent=55 // pred_region
          %s411 = sand.u32 %s132, 1
          %s412 = scalar_lea.sflag [#allocation6], %s411
          %s413 = sand.u32 %s132, 1
          %s414 = smul.addr %s413, 8
          %s415 = scalar_lea.vmem [#allocation5], %s414
          %416 = dma.done %s412, 128
        $region60: #{generator_apply.1} parent=55 // pred_fallthru
          _
      $region56: #{generator_apply.1} parent=5 // pred_fallthru
        _
    $region6: #{generator_apply.1} parent=1 // loop_footer
      %s16 = sadd.s32 1, %s12
    $region7: #{generator_apply.1} parent=1 // loop_footer_branch
      %11 = sbr.rel target = $region3
    $region8: #{generator_apply.1} parent=1 // loop_exit
      _
    %417 = vsyncpa [#allocation6], 1
    %s418 = scalar_lea.sflag [#allocation6], 1
    %419 = vsyncpa %s418, 1

</llo_original>
